<compile_context>
chip_gen: v7x
topology: tpu7x:2x2x1
jax: 0.10.0
libtpu: 0.0.40
codegen_flags: <defaults>
</compile_context>

<pallas_src>
import jax
import jax.numpy as jnp
from jax.experimental import pallas as pl
from jax.experimental.pallas import tpu as pltpu


def _round_up(x, m):
    return (x + m - 1) // m * m


def _fusion_kernel(x_ref, w_ref, b_ref, out_ref):
    # Single fused matmul: (TB, Kp) @ (Kp, Cp) with f32 accumulation,
    # then exactly one broadcasted f32 bias add. Cp is a multiple of 128,
    # so the store below is an unmasked, lane-dense `vst`.
    acc = jnp.dot(x_ref[...], w_ref[...], preferred_element_type=jnp.float32)
    out_ref[...] = (acc + b_ref[...]).astype(out_ref.dtype)


def rules_from_probabilities(vis_feat, txt_feat, aud_feat, params,
                             *, block_b=512, compute_dtype=jnp.bfloat16):
    """Pallas implementation of RulesFromProbabilities.forward given the
    already-computed backbone features."""
    B = vis_feat.shape[0]
    C = params["bf"].shape[1]

    # ---- wrapper-side algebra (tiny, done once in plain JAX) --------------
    wf = params["wf"]
    wf_v, wf_t, wf_a = wf[0:C], wf[C:2 * C], wf[2 * C:3 * C]
    w_fused = jnp.concatenate(
        [params["wv"] @ wf_v, params["wt"] @ wf_t, params["wa"] @ wf_a],
        axis=0)                                                    # (D_total, C)
    b_fused = (params["bv"] @ wf_v + params["bt"] @ wf_t
               + params["ba"] @ wf_a + params["bf"]).astype(jnp.float32)  # (1, C)

    x = jnp.concatenate([vis_feat, txt_feat, aud_feat], axis=1)    # (B, D_total)
    d_total = x.shape[1]

    # ---- lane/sublane padding + batch tiling ------------------------------
    k_pad = _round_up(d_total, 128)          # contraction dim -> lane aligned
    c_pad = _round_up(C, 128)                # output dim -> lane-dense stores
    tb = min(block_b, _round_up(B, 8))       # batch tile (multiple of 8)
    b_pad = _round_up(B, tb)

    x = jnp.pad(x, ((0, b_pad - B), (0, k_pad - d_total))).astype(compute_dtype)
    w_fused = jnp.pad(
        w_fused, ((0, k_pad - d_total), (0, c_pad - C))).astype(compute_dtype)
    b_fused = jnp.pad(b_fused, ((0, 0), (0, c_pad - C)))           # stays f32

    out = pl.pallas_call(
        _fusion_kernel,
        out_shape=jax.ShapeDtypeStruct((b_pad, c_pad), jnp.float32),
        grid_spec=pltpu.PrefetchScalarGridSpec(
            num_scalar_prefetch=0,
            grid=(b_pad // tb,),
            in_specs=[
                pl.BlockSpec((tb, k_pad), lambda i: (i, 0)),    # features (tiled on B)
                pl.BlockSpec((k_pad, c_pad), lambda i: (0, 0)),  # fused weight (resident)
                pl.BlockSpec((1, c_pad), lambda i: (0, 0)),      # fused bias  (resident)
            ],
            out_specs=pl.BlockSpec((tb, c_pad), lambda i: (i, 0)),
        ),
        compiler_params=pltpu.CompilerParams(
            dimension_semantics=("parallel",)),
    )(x, w_fused, b_fused)
    return out[:B, :C]


def init_params(key, d_vis, d_txt, d_aud, num_classes):
    """Deterministic parameter init (Linear-style uniform fan-in bounds),
    weights stored (in, out)."""
    ks = jax.random.split(key, 8)

    def lin(kw, kb, fan_in, fan_out):
        bound = 1.0 / jnp.sqrt(fan_in)
        w = jax.random.uniform(kw, (fan_in, fan_out), jnp.float32, -bound, bound)
        b = jax.random.uniform(kb, (1, fan_out), jnp.float32, -bound, bound)
        return w, b

    wv, bv = lin(ks[0], ks[1], d_vis, num_classes)
    wt, bt = lin(ks[2], ks[3], d_txt, num_classes)
    wa, ba = lin(ks[4], ks[5], d_aud, num_classes)
    wf, bf = lin(ks[6], ks[7], num_classes * 3, num_classes)
    return dict(wv=wv, bv=bv, wt=wt, bt=bt, wa=wa, ba=ba, wf=wf, bf=bf)


def reference_forward(vis_feat, txt_feat, aud_feat, p):
    """Plain-JAX f32 reference of the module forward (for self-check)."""
    vp = vis_feat @ p["wv"] + p["bv"]
    tp = txt_feat @ p["wt"] + p["bt"]
    ap = aud_feat @ p["wa"] + p["ba"]
    combined = jnp.concatenate([vp, tp, ap], axis=1)   # dropout == identity
    return combined @ p["wf"] + p["bf"]


if __name__ == "__main__":
    key = jax.random.PRNGKey(0)
    k_in, k_enc, k_head = jax.random.split(key, 3)

    # Small synthetic shapes.
    B = 8
    IMG_DIM, TXT_DIM, AUD_DIM = 64, 48, 40          # raw modality inputs
    VIS_OUT, TXT_OUT, AUD_OUT = 32, 24, 16          # backbone output_size's
    NUM_CLASSES = 4

    ki1, ki2, ki3 = jax.random.split(k_in, 3)
    x_img = jax.random.normal(ki1, (B, IMG_DIM), jnp.float32)
    x_text = jax.random.normal(ki2, (B, TXT_DIM), jnp.float32)
    x_audio = jax.random.normal(ki3, (B, AUD_DIM), jnp.float32)

    # Stand-in backbone models (visual_model / textual_model / audio_model):
    # deterministic linear encoders, computed in plain JAX (glue).
    ke1, ke2, ke3 = jax.random.split(k_enc, 3)
    enc_v = jax.random.normal(ke1, (IMG_DIM, VIS_OUT), jnp.float32) / jnp.sqrt(IMG_DIM)
    enc_t = jax.random.normal(ke2, (TXT_DIM, TXT_OUT), jnp.float32) / jnp.sqrt(TXT_DIM)
    enc_a = jax.random.normal(ke3, (AUD_DIM, AUD_OUT), jnp.float32) / jnp.sqrt(AUD_DIM)
    vis_feat = x_img @ enc_v
    txt_feat = x_text @ enc_t
    aud_feat = x_audio @ enc_a

    # Fusion-head parameters (the module's own Linear layers).
    params = init_params(k_head, VIS_OUT, TXT_OUT, AUD_OUT, NUM_CLASSES)

    out = rules_from_probabilities(vis_feat, txt_feat, aud_feat, params)
    out = jax.block_until_ready(out)

    ref = reference_forward(vis_feat, txt_feat, aud_feat, params)
    assert out.shape == (B, NUM_CLASSES), out.shape
    # bf16 operands (f32 accumulation) => looser tolerance than pure f32.
    assert jnp.allclose(out, ref, atol=2e-2, rtol=2e-2), "mismatch vs reference"

    print("KERNEL_OK")
</pallas_src>

<mosaic_0001>
module attributes {stable_mosaic.version = 11 : i64} {
  func.func @_fusion_kernel(%arg0: i32, %arg1: memref<8x128xbf16, #tpu.memory_space<vmem>>, %arg2: memref<128x128xbf16, #tpu.memory_space<vmem>>, %arg3: memref<1x128xf32, #tpu.memory_space<vmem>>, %arg4: memref<8x128xf32, #tpu.memory_space<vmem>>) attributes {dimension_semantics = [#tpu.dimension_semantics<parallel>], iteration_bounds = array<i64: 1>, scalar_prefetch = 0 : i64, scratch_operands = 0 : i64, tpu.core_type = #tpu.core_type<tc>, window_params = [{transform_indices = @transform_0, window_bounds = array<i64: 8, 128>}, {pipeline_mode = #tpu.pipeline_mode<synchronous>, transform_indices = @transform_1, window_bounds = array<i64: 128, 128>}, {pipeline_mode = #tpu.pipeline_mode<synchronous>, transform_indices = @transform_2, window_bounds = array<i64: 1, 128>}, {transform_indices = @transform_3, window_bounds = array<i64: 8, 128>}]} {
    %c0 = arith.constant 0 : index
    %c0_0 = arith.constant 0 : index
    %0 = vector.load %arg1[%c0, %c0_0] : memref<8x128xbf16, #tpu.memory_space<vmem>>, vector<8x128xbf16>
    %c0_1 = arith.constant 0 : index
    %c0_2 = arith.constant 0 : index
    %1 = vector.load %arg2[%c0_1, %c0_2] : memref<128x128xbf16, #tpu.memory_space<vmem>>, vector<128x128xbf16>
    %cst = arith.constant dense<0.000000e+00> : vector<8x128xf32>
    %2 = tpu.matmul %0, %1, %cst {dimension_numbers = #tpu.dot_dimension_numbers<[1], [0], [0], [1], [0, 0, 1, 1], [], []>} : vector<8x128xbf16>, vector<128x128xbf16>, vector<8x128xf32> -> vector<8x128xf32>
    %c0_3 = arith.constant 0 : index
    %c0_4 = arith.constant 0 : index
    %3 = vector.load %arg3[%c0_3, %c0_4] : memref<1x128xf32, #tpu.memory_space<vmem>>, vector<1x128xf32>
    %4 = vector.broadcast %3 : vector<1x128xf32> to vector<8x128xf32>
    %5 = arith.addf %2, %4 : vector<8x128xf32>
    %c0_5 = arith.constant 0 : index
    %c0_6 = arith.constant 0 : index
    %6 = vector.load %arg4[%c0_5, %c0_6] : memref<8x128xf32, #tpu.memory_space<vmem>>, vector<8x128xf32>
    tpu.vector_store %arg4[%c0_5, %c0_6], %5 {strides = array<i32>} : memref<8x128xf32, #tpu.memory_space<vmem>>, vector<8x128xf32>,
    return
  }
  func.func @transform_0(%arg0: i32) -> (i32, i32) {
    %c0_i32 = arith.constant 0 : i32
    %c0_i32_0 = arith.constant 0 : i32
    return %arg0, %c0_i32 : i32, i32
  }
  func.func @transform_1(%arg0: i32) -> (i32, i32) {
    %c0_i32 = arith.constant 0 : i32
    %c0_i32_0 = arith.constant 0 : i32
    %c0_i32_1 = arith.constant 0 : i32
    return %c0_i32, %c0_i32_0 : i32, i32
  }
  func.func @transform_2(%arg0: i32) -> (i32, i32) {
    %c0_i32 = arith.constant 0 : i32
    %c0_i32_0 = arith.constant 0 : i32
    %c0_i32_1 = arith.constant 0 : i32
    return %c0_i32, %c0_i32_0 : i32, i32
  }
  func.func @transform_3(%arg0: i32) -> (i32, i32) {
    %c0_i32 = arith.constant 0 : i32
    %c0_i32_0 = arith.constant 0 : i32
    return %arg0, %c0_i32 : i32, i32
  }
}

</mosaic_0001>

<llo_original>
// kernel: tpu_custom_call.1
$region0: #{tpu_custom_call.1}
  #allocation0 [shape = 'u32[]', space=smem, size = 0x4, offset = 0x4, fixed_abs, tag = 'smem constant byte address 0x4 - core index']
  #allocation1 [shape = 'u32[144,128]{1,0:T(1,128)}', space=vmem, size = 0x12000, scoped, tag = 'internal scratch']
  %s0 = inlined_call_operand.hbm [shape: bf16[8,128], index: 0, kind: input, shape index: {}]
  %s1 = inlined_call_operand.hbm [shape: bf16[128,128], index: 1, kind: input, shape index: {}]
  %s2 = inlined_call_operand.vmem [shape: f32[1,128], index: 2, kind: input, shape index: {}]
  %s3 = inlined_call_operand.hbm [shape: f32[8,128], index: 3, kind: output, shape index: {}]
  %s4 = sld [smem:[#allocation0]]
  $region30: #{tpu_custom_call.1} parent=0
    _
  %s6 = ssub.s32 1, %s4
  %s7 = scalar_select 0, %s6, %s4
  $region1: #{tpu_custom_call.1} parent=0
    #allocation2 [shape = 'u8[2048]{0}', space=vmem, size = 0x800, scoped, tag = 'input window, operand 0, single buffered']
    #allocation3 [shape = 's32[1]{0}', space=sflag, size = 0x4, scoped, tag = 'scoped memory for tpu_custom_call.1']
    #allocation4 [shape = 's32[1]{0}', space=sflag, size = 0x4, scoped, tag = 'scoped memory for tpu_custom_call.1']
    #allocation5 [shape = 'u8[32768]{0}', space=vmem, size = 0x8000, scoped, tag = 'input window, operand 1, single buffered']
    #allocation6 [shape = 's32[1]{0}', space=sflag, size = 0x4, scoped, tag = 'scoped memory for tpu_custom_call.1']
    #allocation7 [shape = 'u8[4096]{0}', space=vmem, size = 0x1000, scoped, tag = 'output window, operand 0, single buffered']
    %8 = vsyncpa [#allocation3], 0
    %9 = vsyncpa [#allocation6], 0
    %10 = vsyncpa [#allocation4], 0
    // Predicated region
    $region2: #{tpu_custom_call.1} parent=1 // pred_check
      _
    $region3: #{tpu_custom_call.1} parent=1 // pred_check_branch
      %12 = sbr.rel (0) target = $region5
    $region4: #{tpu_custom_call.1} parent=1 // pred_region
      %s14 = ssub.s32 64, 64
      %15 = vsyncadd [#allocation3], %s14
      %s17 = sshll.u32 [#allocation2], 4
      %s18 = int_to_ptr.vmem [resolvable:$true] %s17
      %20 = dma.hbm_to_vmem [thread:$0]  %s0, 64, %s18, [#allocation3]
    $region5: #{tpu_custom_call.1} parent=1 // pred_fallthru
      _
    // Predicated region
    $region6: #{tpu_custom_call.1} parent=1 // pred_check
      _
    $region7: #{tpu_custom_call.1} parent=1 // pred_check_branch
      %22 = sbr.rel (0) target = $region9
    $region8: #{tpu_custom_call.1} parent=1 // pred_region
      %s24 = ssub.s32 1024, 1024
      %25 = vsyncadd [#allocation6], %s24
      %s26 = sshll.u32 [#allocation5], 4
      %s27 = int_to_ptr.vmem [resolvable:$true] %s26
      %32 = dma.hbm_to_vmem [thread:$0]  %s1, 1024, %s27, [#allocation6], 64, 64, 4
    $region9: #{tpu_custom_call.1} parent=1 // pred_fallthru
      _
    // Predicated region
    $region10: #{tpu_custom_call.1} parent=1 // pred_check
      _
    $region11: #{tpu_custom_call.1} parent=1 // pred_check_branch
      %34 = sbr.rel (0) target = $region13
    $region12: #{tpu_custom_call.1} parent=1 // pred_region
      _
    $region13: #{tpu_custom_call.1} parent=1 // pred_fallthru
      _
    // Predicated region
    $region14: #{tpu_custom_call.1} parent=1 // pred_check
      _
    $region15: #{tpu_custom_call.1} parent=1 // pred_check_branch
      %36 = sbr.rel (0) target = $region17
    $region16: #{tpu_custom_call.1} parent=1 // pred_region
      %37 = dma.done [#allocation3], 64
    $region17: #{tpu_custom_call.1} parent=1 // pred_fallthru
      _
    // Predicated region
    $region18: #{tpu_custom_call.1} parent=1 // pred_check
      _
    $region19: #{tpu_custom_call.1} parent=1 // pred_check_branch
      %39 = sbr.rel (0) target = $region21
    $region20: #{tpu_custom_call.1} parent=1 // pred_region
      %40 = dma.done [#allocation6], 1024
    $region21: #{tpu_custom_call.1} parent=1 // pred_fallthru
      _
    %v42 = vld [vmem:[#allocation2] sm:$0xf]
    %v43 = vld [vmem:[#allocation5] sm:$0xf]
    %v44 = vld [vmem:[#allocation5 + $0x4] sm:$0xf]
    %v45 = vld [vmem:[#allocation5 + $0x8] sm:$0xf]
    %v46 = vld [vmem:[#allocation5 + $0xc] sm:$0xf]
    %v47 = vld [vmem:[#allocation5 + $0x10] sm:$0xf]
    %v48 = vld [vmem:[#allocation5 + $0x14] sm:$0xf]
    %v49 = vld [vmem:[#allocation5 + $0x18] sm:$0xf]
    %v50 = vld [vmem:[#allocation5 + $0x1c] sm:$0xf]
    %v51 = vld [vmem:[#allocation5 + $0x20] sm:$0xf]
    %v52 = vld [vmem:[#allocation5 + $0x24] sm:$0xf]
    %v53 = vld [vmem:[#allocation5 + $0x28] sm:$0xf]
    %v54 = vld [vmem:[#allocation5 + $0x2c] sm:$0xf]
    %v55 = vld [vmem:[#allocation5 + $0x30] sm:$0xf]
    %v56 = vld [vmem:[#allocation5 + $0x34] sm:$0xf]
    %v57 = vld [vmem:[#allocation5 + $0x38] sm:$0xf]
    %v58 = vld [vmem:[#allocation5 + $0x3c] sm:$0xf]
    %v59 = vld [vmem:[%s2] sm:$0x1]
    %v61 = vlaneseq
    %v62 = vshrl.u32 %v61, 7
    %v63 = vsub.s32 0, %v62
    %v64 = vrot.slane %v59, %v63
    %v82 = vunpack.c.l.b16 %v43
    %v83 = vunpack.c.l.b16 %v44
    %v84 = vunpack.c.l.b16 %v45
    %v85 = vunpack.c.l.b16 %v46
    %v86 = vunpack.c.l.b16 %v47
    %v87 = vunpack.c.l.b16 %v48
    %v88 = vunpack.c.l.b16 %v49
    %v89 = vunpack.c.l.b16 %v50
    %v90 = vunpack.c.l.b16 %v51
    %v91 = vunpack.c.l.b16 %v52
    %v92 = vunpack.c.l.b16 %v53
    %v93 = vunpack.c.l.b16 %v54
    %v94 = vunpack.c.l.b16 %v55
    %v95 = vunpack.c.l.b16 %v56
    %v96 = vunpack.c.l.b16 %v57
    %v97 = vunpack.c.l.b16 %v58
    %v98 = vpack.c.b16 %v83, %v82
    %v99 = vpack.c.b16 %v85, %v84
    %v100 = vpack.c.b16 %v87, %v86
    %v101 = vpack.c.b16 %v89, %v88
    %v102 = vpack.c.b16 %v91, %v90
    %v103 = vpack.c.b16 %v93, %v92
    %v104 = vpack.c.b16 %v95, %v94
    %v105 = vpack.c.b16 %v97, %v96
    %114 = vmatprep.subr.bf16.mxu0 0
    %115 = vmatpush1.bf16.msra.mxu0 %v98
    %116 = vmatprep.subr.bf16.mxu0 0
    %117 = vmatpush1.bf16.msra.mxu0 %v99
    %118 = vmatprep.subr.bf16.mxu0 0
    %119 = vmatpush1.bf16.msra.mxu0 %v100
    %120 = vmatprep.subr.bf16.mxu0 0
    %121 = vmatpush1.bf16.msra.mxu0 %v101
    %122 = vmatprep.subr.bf16.mxu0 0
    %123 = vmatpush1.bf16.msra.mxu0 %v102
    %124 = vmatprep.subr.bf16.mxu0 0
    %125 = vmatpush1.bf16.msra.mxu0 %v103
    %126 = vmatprep.subr.bf16.mxu0 0
    %127 = vmatpush1.bf16.msra.mxu0 %v104
    %128 = vmatprep.subr.bf16.mxu0 0
    %129 = vmatpush1.bf16.msra.mxu0 %v105
    %130 = vmatprep.subr.bf16.mxu0 0
    %131 = vmatpush1.bf16.msra.mxu0 0
    %132 = vmatprep.subr.bf16.mxu0 0
    %133 = vmatpush1.bf16.msra.mxu0 0
    %134 = vmatprep.subr.bf16.mxu0 0
    %135 = vmatpush1.bf16.msra.mxu0 0
    %136 = vmatprep.subr.bf16.mxu0 0
    %137 = vmatpush1.bf16.msra.mxu0 0
    %138 = vmatprep.subr.bf16.mxu0 0
    %139 = vmatpush1.bf16.msra.mxu0 0
    %140 = vmatprep.subr.bf16.mxu0 0
    %141 = vmatpush1.bf16.msra.mxu0 0
    %142 = vmatprep.subr.bf16.mxu0 0
    %143 = vmatpush1.bf16.msra.mxu0 0
    %144 = vmatprep.subr.bf16.mxu0 0
    %145 = vmatpush1.bf16.msra.mxu0 0
    %146 = vmatprep.mubr.bf16.mxu0 0
    %147 = vmatmul.mubr.bf16.gmra.mrb[0].mxu0 %v42
    %v148 = vpop.f32.mrb[0].mxu0
    %v149 = vadd.f32 %v64, %v148
    %v150 = vpop.f32.mrb[0].mxu0
    %v151 = vpop.f32.mrb[0].mxu0
    %v152 = vpop.f32.mrb[0].mxu0
    %153 = vdwg.mxu0
    %154 = vst [vmem:[#allocation7] sm:$0xff] %v149
    // Predicated region
    $region22: #{tpu_custom_call.1} parent=1 // pred_check
      _
    $region23: #{tpu_custom_call.1} parent=1 // pred_check_branch
      %156 = sbr.rel (0) target = $region25
    $region24: #{tpu_custom_call.1} parent=1 // pred_region
      %s158 = ssub.s32 128, 128
      %159 = vsyncadd [#allocation4], %s158
      %s161 = sshll.u32 [#allocation7], 4
      %s162 = int_to_ptr.vmem [resolvable:$true] %s161
      %164 = dma.vmem_to_hbm [thread:$0]  %s162, 128, %s3, [#allocation4]
    $region25: #{tpu_custom_call.1} parent=1 // pred_fallthru
      _
    // Predicated region
    $region26: #{tpu_custom_call.1} parent=1 // pred_check
      _
    $region27: #{tpu_custom_call.1} parent=1 // pred_check_branch
      %166 = sbr.rel (0) target = $region29
    $region28: #{tpu_custom_call.1} parent=1 // pred_region
      %167 = dma.done [#allocation4], 128
    $region29: #{tpu_custom_call.1} parent=1 // pred_fallthru
      _
    %168 = vsyncpa [#allocation3], 1
    %169 = vsyncpa [#allocation6], 1
    %170 = vsyncpa [#allocation4], 1

</llo_original>
